<compile_context>
chip_gen: v7x
topology: tpu7x:2x2x1
jax: 0.10.0
libtpu: 0.0.40
codegen_flags: <defaults>
</compile_context>

<pallas_src>
import math

import jax
import jax.numpy as jnp
from jax.experimental import pallas as pl
from jax.experimental.pallas import tpu as pltpu


def residual_gmlp_kernel(x_ref, w_res_ref, b_res_ref, w_gate_ref, b_gate_ref,
                         m_avg_ref, gamma_ref, beta_ref, w_sgu_ref, b_sgu_ref,
                         w_out_ref, b_out_ref, o_ref):
    x = x_ref[...]                                      # (bt, N*D) lane-dense

    def mm(a, b):
        return jnp.dot(a, b, preferred_element_type=jnp.float32)

    # ---- proj_in (block-diagonal over the N tokens) + exact erf-GELU ----
    # res / gate come from pre-split weights: no in-kernel lane split of h.
    res = mm(x, w_res_ref[...]) + b_res_ref[...]        # (bt, N*Dh)
    gate = mm(x, w_gate_ref[...]) + b_gate_ref[...]     # (bt, N*Dh)
    inv_sqrt2 = 1.0 / math.sqrt(2.0)
    res = 0.5 * res * (1.0 + jax.lax.erf(res * inv_sqrt2))
    gate = 0.5 * gate * (1.0 + jax.lax.erf(gate * inv_sqrt2))

    # ---- LayerNorm over each token's Dh lane-group (eps=1e-5) ----
    # Per-group mean / variance via the block-averaging matrix keeps the data
    # lane-dense (no sub-128 slicing, no sublane reductions).
    mu = mm(gate, m_avg_ref[...])
    cen = gate - mu
    var = mm(cen * cen, m_avg_ref[...])
    gate = cen * jax.lax.rsqrt(var + 1e-5)
    gate = gate * gamma_ref[...] + beta_ref[...]

    # ---- spatial gating (heads=1): kron(W_sgu.T, I_Dh) on the flat layout ----
    gate = mm(gate, w_sgu_ref[...]) + b_sgu_ref[...]

    # ---- gate * res, proj_out (block-diagonal), Residual: fn(x) + x ----
    y = mm(gate * res, w_out_ref[...]) + b_out_ref[...]  # (bt, N*D)
    o_ref[...] = (y + x).astype(o_ref.dtype)


def residual_gmlp_block(x, params):
    """x: (B, N, D) float32. params: dict of weights (see make_params)."""
    B, N, D = x.shape
    dim_ff = params["w_in"].shape[1]
    Dh = dim_ff // 2
    ND, NDh = N * D, N * Dh
    dt = x.dtype

    # ---- flatten / pre-expand weights wrapper-side (one-time, tiny) ----
    eye_n = jnp.eye(N, dtype=dt)
    w_res = jnp.kron(eye_n, params["w_in"][:, :Dh])            # (ND, NDh)
    w_gate = jnp.kron(eye_n, params["w_in"][:, Dh:])           # (ND, NDh)
    b_res = jnp.tile(params["b_in"][:, :Dh], (1, N))           # (1, NDh)
    b_gate = jnp.tile(params["b_in"][:, Dh:], (1, N))          # (1, NDh)
    m_avg = jnp.kron(eye_n, jnp.full((Dh, Dh), 1.0 / Dh, dt))  # (NDh, NDh)
    gamma = jnp.tile(params["ln_gamma"], (1, N))               # (1, NDh)
    beta = jnp.tile(params["ln_beta"], (1, N))                 # (1, NDh)
    w_sgu = jnp.kron(params["w_sgu"].T, jnp.eye(Dh, dtype=dt))  # (NDh, NDh)
    b_sgu = jnp.repeat(params["b_sgu"].reshape(-1), Dh).reshape(1, NDh)
    w_out = jnp.kron(eye_n, params["w_out"])                   # (NDh, ND)
    b_out = jnp.tile(params["b_out"], (1, N))                  # (1, ND)

    x2 = x.reshape(B, ND)                                      # lane-dense I/O

    # ---- batch tiling: whole batch per step unless B is large enough to
    # split into >=2 sublane-aligned chunks (v7x has 2 TensorCores). ----
    bt = B
    if B % 16 == 0:
        bt = B // 2
        while bt > 1024 and bt % 2 == 0:
            bt //= 2
    grid = (B // bt,)

    def full(arr):
        nd = arr.ndim
        return pl.BlockSpec(arr.shape, lambda g, _nd=nd: (0,) * _nd)

    weights = (w_res, b_res, w_gate, b_gate, m_avg, gamma, beta,
               w_sgu, b_sgu, w_out, b_out)

    flops = 2 * B * (ND * NDh * 2 + NDh * NDh * 3 + NDh * ND)
    bytes_accessed = 2 * x2.size * 4 + sum(int(a.size) * 4 for a in weights)
    cost = pl.CostEstimate(flops=flops,
                           transcendentals=B * 3 * NDh,
                           bytes_accessed=bytes_accessed)

    out2 = pl.pallas_call(
        residual_gmlp_kernel,
        out_shape=jax.ShapeDtypeStruct((B, ND), dt),
        grid_spec=pltpu.PrefetchScalarGridSpec(
            num_scalar_prefetch=0,
            grid=grid,
            in_specs=[pl.BlockSpec((bt, ND), lambda g: (g, 0))] +
                     [full(a) for a in weights],
            out_specs=pl.BlockSpec((bt, ND), lambda g: (g, 0)),
        ),
        compiler_params=pltpu.CompilerParams(
            dimension_semantics=("parallel",)),
        cost_estimate=cost,
    )(x2, *weights)

    return out2.reshape(B, N, D)


def residual_gmlp_ref(x, params):
    """Pure-JAX reference: Residual(gMLPBlock)(x) = gMLPBlock(x) + x."""
    h = x @ params["w_in"] + params["b_in"]
    h = 0.5 * h * (1.0 + jax.lax.erf(h / math.sqrt(2.0)))
    d_half = h.shape[-1] // 2
    res, gate = h[..., :d_half], h[..., d_half:]
    mu = jnp.mean(gate, axis=-1, keepdims=True)
    var = jnp.mean((gate - mu) ** 2, axis=-1, keepdims=True)
    gate = (gate - mu) * jax.lax.rsqrt(var + 1e-5)
    gate = gate * params["ln_gamma"] + params["ln_beta"]
    gate = jnp.einsum("bnd,mn->bmd", gate, params["w_sgu"]) + params["b_sgu"][None, :, :]
    y = (gate * res) @ params["w_out"] + params["b_out"]
    return y + x                                        # Residual: fn(x) + x


def make_params(key, dim, dim_ff, seq_len):
    d_half = dim_ff // 2
    ks = jax.random.split(key, 6)
    init_eps = 0.001 / seq_len
    return {
        # Linear weights stored as (in, out); y = x @ W + b
        "w_in":  jax.random.normal(ks[0], (dim, dim_ff), jnp.float32) * (1.0 / math.sqrt(dim)),
        "b_in":  jax.random.normal(ks[1], (1, dim_ff), jnp.float32) * 0.02,
        "ln_gamma": jnp.ones((1, d_half), jnp.float32),
        "ln_beta":  jnp.zeros((1, d_half), jnp.float32),
        "w_sgu": jax.random.uniform(ks[2], (seq_len, seq_len), jnp.float32,
                                    minval=-init_eps, maxval=init_eps),
        "b_sgu": jnp.ones((seq_len, 1), jnp.float32),
        "w_out": jax.random.normal(ks[3], (d_half, dim), jnp.float32) * (1.0 / math.sqrt(d_half)),
        "b_out": jax.random.normal(ks[4], (1, dim), jnp.float32) * 0.02,
    }


if __name__ == "__main__":
    B, N, DIM, DIM_FF = 2, 8, 16, 32

    key = jax.random.PRNGKey(0)
    kx, kp = jax.random.split(key)
    x = jax.random.normal(kx, (B, N, DIM), jnp.float32)
    params = make_params(kp, DIM, DIM_FF, N)

    out = residual_gmlp_block(x, params)
    out = jax.block_until_ready(out)

    ref = residual_gmlp_ref(x, params)
    assert out.shape == (B, N, DIM)
    assert jnp.allclose(out, ref, atol=2e-3, rtol=2e-3), "mismatch vs pure-JAX reference"

    print("KERNEL_OK")
</pallas_src>

<mosaic_0001>
module attributes {stable_mosaic.version = 11 : i64} {
  func.func @residual_gmlp_kernel(%arg0: i32, %arg1: memref<2x128xf32, #tpu.memory_space<vmem>>, %arg2: memref<128x128xf32, #tpu.memory_space<vmem>>, %arg3: memref<1x128xf32, #tpu.memory_space<vmem>>, %arg4: memref<128x128xf32, #tpu.memory_space<vmem>>, %arg5: memref<1x128xf32, #tpu.memory_space<vmem>>, %arg6: memref<128x128xf32, #tpu.memory_space<vmem>>, %arg7: memref<1x128xf32, #tpu.memory_space<vmem>>, %arg8: memref<1x128xf32, #tpu.memory_space<vmem>>, %arg9: memref<128x128xf32, #tpu.memory_space<vmem>>, %arg10: memref<1x128xf32, #tpu.memory_space<vmem>>, %arg11: memref<128x128xf32, #tpu.memory_space<vmem>>, %arg12: memref<1x128xf32, #tpu.memory_space<vmem>>, %arg13: memref<2x128xf32, #tpu.memory_space<vmem>>) attributes {dimension_semantics = [#tpu.dimension_semantics<parallel>], iteration_bounds = array<i64: 1>, scalar_prefetch = 0 : i64, scratch_operands = 0 : i64, tpu.core_type = #tpu.core_type<tc>, window_params = [{transform_indices = @transform_0, window_bounds = array<i64: 2, 128>}, {pipeline_mode = #tpu.pipeline_mode<synchronous>, transform_indices = @transform_1, window_bounds = array<i64: 128, 128>}, {pipeline_mode = #tpu.pipeline_mode<synchronous>, transform_indices = @transform_2, window_bounds = array<i64: 1, 128>}, {pipeline_mode = #tpu.pipeline_mode<synchronous>, transform_indices = @transform_3, window_bounds = array<i64: 128, 128>}, {pipeline_mode = #tpu.pipeline_mode<synchronous>, transform_indices = @transform_4, window_bounds = array<i64: 1, 128>}, {pipeline_mode = #tpu.pipeline_mode<synchronous>, transform_indices = @transform_5, window_bounds = array<i64: 128, 128>}, {pipeline_mode = #tpu.pipeline_mode<synchronous>, transform_indices = @transform_6, window_bounds = array<i64: 1, 128>}, {pipeline_mode = #tpu.pipeline_mode<synchronous>, transform_indices = @transform_7, window_bounds = array<i64: 1, 128>}, {pipeline_mode = #tpu.pipeline_mode<synchronous>, transform_indices = @transform_8, window_bounds = array<i64: 128, 128>}, {pipeline_mode = #tpu.pipeline_mode<synchronous>, transform_indices = @transform_9, window_bounds = array<i64: 1, 128>}, {pipeline_mode = #tpu.pipeline_mode<synchronous>, transform_indices = @transform_10, window_bounds = array<i64: 128, 128>}, {pipeline_mode = #tpu.pipeline_mode<synchronous>, transform_indices = @transform_11, window_bounds = array<i64: 1, 128>}, {transform_indices = @transform_12, window_bounds = array<i64: 2, 128>}]} {
    %c0 = arith.constant 0 : index
    %c0_0 = arith.constant 0 : index
    %0 = vector.load %arg1[%c0, %c0_0] : memref<2x128xf32, #tpu.memory_space<vmem>>, vector<2x128xf32>
    %c0_1 = arith.constant 0 : index
    %c0_2 = arith.constant 0 : index
    %1 = vector.load %arg2[%c0_1, %c0_2] : memref<128x128xf32, #tpu.memory_space<vmem>>, vector<128x128xf32>
    %cst = arith.constant dense<0.000000e+00> : vector<2x128xf32>
    %2 = tpu.matmul %0, %1, %cst {dimension_numbers = #tpu.dot_dimension_numbers<[1], [0], [0], [1], [0, 0, 1, 1], [], []>} : vector<2x128xf32>, vector<128x128xf32>, vector<2x128xf32> -> vector<2x128xf32>
    %c0_3 = arith.constant 0 : index
    %c0_4 = arith.constant 0 : index
    %3 = vector.load %arg3[%c0_3, %c0_4] : memref<1x128xf32, #tpu.memory_space<vmem>>, vector<1x128xf32>
    %4 = vector.broadcast %3 : vector<1x128xf32> to vector<2x128xf32>
    %5 = arith.addf %2, %4 : vector<2x128xf32>
    %c0_5 = arith.constant 0 : index
    %c0_6 = arith.constant 0 : index
    %6 = vector.load %arg4[%c0_5, %c0_6] : memref<128x128xf32, #tpu.memory_space<vmem>>, vector<128x128xf32>
    %cst_7 = arith.constant dense<0.000000e+00> : vector<2x128xf32>
    %7 = tpu.matmul %0, %6, %cst_7 {dimension_numbers = #tpu.dot_dimension_numbers<[1], [0], [0], [1], [0, 0, 1, 1], [], []>} : vector<2x128xf32>, vector<128x128xf32>, vector<2x128xf32> -> vector<2x128xf32>
    %c0_8 = arith.constant 0 : index
    %c0_9 = arith.constant 0 : index
    %8 = vector.load %arg5[%c0_8, %c0_9] : memref<1x128xf32, #tpu.memory_space<vmem>>, vector<1x128xf32>
    %9 = vector.broadcast %8 : vector<1x128xf32> to vector<2x128xf32>
    %10 = arith.addf %7, %9 : vector<2x128xf32>
    %cst_10 = arith.constant 5.000000e-01 : f32
    %11 = vector.broadcast %cst_10 : f32 to vector<2x128xf32>
    %12 = arith.mulf %11, %5 : vector<2x128xf32>
    %cst_11 = arith.constant 0.707106769 : f32
    %13 = vector.broadcast %cst_11 : f32 to vector<2x128xf32>
    %14 = arith.mulf %5, %13 : vector<2x128xf32>
    %15 = math.erf %14 : vector<2x128xf32>
    %cst_12 = arith.constant 1.000000e+00 : f32
    %16 = vector.broadcast %cst_12 : f32 to vector<2x128xf32>
    %17 = arith.addf %16, %15 : vector<2x128xf32>
    %18 = arith.mulf %12, %17 : vector<2x128xf32>
    %cst_13 = arith.constant 5.000000e-01 : f32
    %19 = vector.broadcast %cst_13 : f32 to vector<2x128xf32>
    %20 = arith.mulf %19, %10 : vector<2x128xf32>
    %cst_14 = arith.constant 0.707106769 : f32
    %21 = vector.broadcast %cst_14 : f32 to vector<2x128xf32>
    %22 = arith.mulf %10, %21 : vector<2x128xf32>
    %23 = math.erf %22 : vector<2x128xf32>
    %cst_15 = arith.constant 1.000000e+00 : f32
    %24 = vector.broadcast %cst_15 : f32 to vector<2x128xf32>
    %25 = arith.addf %24, %23 : vector<2x128xf32>
    %26 = arith.mulf %20, %25 : vector<2x128xf32>
    %c0_16 = arith.constant 0 : index
    %c0_17 = arith.constant 0 : index
    %27 = vector.load %arg6[%c0_16, %c0_17] : memref<128x128xf32, #tpu.memory_space<vmem>>, vector<128x128xf32>
    %cst_18 = arith.constant dense<0.000000e+00> : vector<2x128xf32>
    %28 = tpu.matmul %26, %27, %cst_18 {dimension_numbers = #tpu.dot_dimension_numbers<[1], [0], [0], [1], [0, 0, 1, 1], [], []>} : vector<2x128xf32>, vector<128x128xf32>, vector<2x128xf32> -> vector<2x128xf32>
    %29 = arith.subf %26, %28 : vector<2x128xf32>
    %30 = arith.mulf %29, %29 : vector<2x128xf32>
    %c0_19 = arith.constant 0 : index
    %c0_20 = arith.constant 0 : index
    %31 = vector.load %arg6[%c0_19, %c0_20] : memref<128x128xf32, #tpu.memory_space<vmem>>, vector<128x128xf32>
    %cst_21 = arith.constant dense<0.000000e+00> : vector<2x128xf32>
    %32 = tpu.matmul %30, %31, %cst_21 {dimension_numbers = #tpu.dot_dimension_numbers<[1], [0], [0], [1], [0, 0, 1, 1], [], []>} : vector<2x128xf32>, vector<128x128xf32>, vector<2x128xf32> -> vector<2x128xf32>
    %cst_22 = arith.constant 9.99999974E-6 : f32
    %33 = vector.broadcast %cst_22 : f32 to vector<2x128xf32>
    %34 = arith.addf %32, %33 : vector<2x128xf32>
    %35 = math.rsqrt %34 : vector<2x128xf32>
    %36 = arith.mulf %29, %35 : vector<2x128xf32>
    %c0_23 = arith.constant 0 : index
    %c0_24 = arith.constant 0 : index
    %37 = vector.load %arg7[%c0_23, %c0_24] : memref<1x128xf32, #tpu.memory_space<vmem>>, vector<1x128xf32>
    %38 = vector.broadcast %37 : vector<1x128xf32> to vector<2x128xf32>
    %39 = arith.mulf %36, %38 : vector<2x128xf32>
    %c0_25 = arith.constant 0 : index
    %c0_26 = arith.constant 0 : index
    %40 = vector.load %arg8[%c0_25, %c0_26] : memref<1x128xf32, #tpu.memory_space<vmem>>, vector<1x128xf32>
    %41 = vector.broadcast %40 : vector<1x128xf32> to vector<2x128xf32>
    %42 = arith.addf %39, %41 : vector<2x128xf32>
    %c0_27 = arith.constant 0 : index
    %c0_28 = arith.constant 0 : index
    %43 = vector.load %arg9[%c0_27, %c0_28] : memref<128x128xf32, #tpu.memory_space<vmem>>, vector<128x128xf32>
    %cst_29 = arith.constant dense<0.000000e+00> : vector<2x128xf32>
    %44 = tpu.matmul %42, %43, %cst_29 {dimension_numbers = #tpu.dot_dimension_numbers<[1], [0], [0], [1], [0, 0, 1, 1], [], []>} : vector<2x128xf32>, vector<128x128xf32>, vector<2x128xf32> -> vector<2x128xf32>
    %c0_30 = arith.constant 0 : index
    %c0_31 = arith.constant 0 : index
    %45 = vector.load %arg10[%c0_30, %c0_31] : memref<1x128xf32, #tpu.memory_space<vmem>>, vector<1x128xf32>
    %46 = vector.broadcast %45 : vector<1x128xf32> to vector<2x128xf32>
    %47 = arith.addf %44, %46 : vector<2x128xf32>
    %48 = arith.mulf %47, %18 : vector<2x128xf32>
    %c0_32 = arith.constant 0 : index
    %c0_33 = arith.constant 0 : index
    %49 = vector.load %arg11[%c0_32, %c0_33] : memref<128x128xf32, #tpu.memory_space<vmem>>, vector<128x128xf32>
    %cst_34 = arith.constant dense<0.000000e+00> : vector<2x128xf32>
    %50 = tpu.matmul %48, %49, %cst_34 {dimension_numbers = #tpu.dot_dimension_numbers<[1], [0], [0], [1], [0, 0, 1, 1], [], []>} : vector<2x128xf32>, vector<128x128xf32>, vector<2x128xf32> -> vector<2x128xf32>
    %c0_35 = arith.constant 0 : index
    %c0_36 = arith.constant 0 : index
    %51 = vector.load %arg12[%c0_35, %c0_36] : memref<1x128xf32, #tpu.memory_space<vmem>>, vector<1x128xf32>
    %52 = vector.broadcast %51 : vector<1x128xf32> to vector<2x128xf32>
    %53 = arith.addf %50, %52 : vector<2x128xf32>
    %54 = arith.addf %53, %0 : vector<2x128xf32>
    %c0_37 = arith.constant 0 : index
    %c0_38 = arith.constant 0 : index
    %55 = vector.load %arg13[%c0_37, %c0_38] : memref<2x128xf32, #tpu.memory_space<vmem>>, vector<2x128xf32>
    tpu.vector_store %arg13[%c0_37, %c0_38], %54 {strides = array<i32>} : memref<2x128xf32, #tpu.memory_space<vmem>>, vector<2x128xf32>,
    return
  }
  func.func @transform_0(%arg0: i32) -> (i32, i32) {
    %c0_i32 = arith.constant 0 : i32
    %c0_i32_0 = arith.constant 0 : i32
    return %arg0, %c0_i32 : i32, i32
  }
  func.func @transform_1(%arg0: i32) -> (i32, i32) {
    %c0_i32 = arith.constant 0 : i32
    %c0_i32_0 = arith.constant 0 : i32
    %c0_i32_1 = arith.constant 0 : i32
    return %c0_i32, %c0_i32_0 : i32, i32
  }
  func.func @transform_2(%arg0: i32) -> (i32, i32) {
    %c0_i32 = arith.constant 0 : i32
    %c0_i32_0 = arith.constant 0 : i32
    %c0_i32_1 = arith.constant 0 : i32
    return %c0_i32, %c0_i32_0 : i32, i32
  }
  func.func @transform_3(%arg0: i32) -> (i32, i32) {
    %c0_i32 = arith.constant 0 : i32
    %c0_i32_0 = arith.constant 0 : i32
    %c0_i32_1 = arith.constant 0 : i32
    return %c0_i32, %c0_i32_0 : i32, i32
  }
  func.func @transform_4(%arg0: i32) -> (i32, i32) {
    %c0_i32 = arith.constant 0 : i32
    %c0_i32_0 = arith.constant 0 : i32
    %c0_i32_1 = arith.constant 0 : i32
    return %c0_i32, %c0_i32_0 : i32, i32
  }
  func.func @transform_5(%arg0: i32) -> (i32, i32) {
    %c0_i32 = arith.constant 0 : i32
    %c0_i32_0 = arith.constant 0 : i32
    %c0_i32_1 = arith.constant 0 : i32
    return %c0_i32, %c0_i32_0 : i32, i32
  }
  func.func @transform_6(%arg0: i32) -> (i32, i32) {
    %c0_i32 = arith.constant 0 : i32
    %c0_i32_0 = arith.constant 0 : i32
    %c0_i32_1 = arith.constant 0 : i32
    return %c0_i32, %c0_i32_0 : i32, i32
  }
  func.func @transform_7(%arg0: i32) -> (i32, i32) {
    %c0_i32 = arith.constant 0 : i32
    %c0_i32_0 = arith.constant 0 : i32
    %c0_i32_1 = arith.constant 0 : i32
    return %c0_i32, %c0_i32_0 : i32, i32
  }
  func.func @transform_8(%arg0: i32) -> (i32, i32) {
    %c0_i32 = arith.constant 0 : i32
    %c0_i32_0 = arith.constant 0 : i32
    %c0_i32_1 = arith.constant 0 : i32
    return %c0_i32, %c0_i32_0 : i32, i32
  }
  func.func @transform_9(%arg0: i32) -> (i32, i32) {
    %c0_i32 = arith.constant 0 : i32
    %c0_i32_0 = arith.constant 0 : i32
    %c0_i32_1 = arith.constant 0 : i32
    return %c0_i32, %c0_i32_0 : i32, i32
  }
  func.func @transform_10(%arg0: i32) -> (i32, i32) {
    %c0_i32 = arith.constant 0 : i32
    %c0_i32_0 = arith.constant 0 : i32
    %c0_i32_1 = arith.constant 0 : i32
    return %c0_i32, %c0_i32_0 : i32, i32
  }
  func.func @transform_11(%arg0: i32) -> (i32, i32) {
    %c0_i32 = arith.constant 0 : i32
    %c0_i32_0 = arith.constant 0 : i32
    %c0_i32_1 = arith.constant 0 : i32
    return %c0_i32, %c0_i32_0 : i32, i32
  }
  func.func @transform_12(%arg0: i32) -> (i32, i32) {
    %c0_i32 = arith.constant 0 : i32
    %c0_i32_0 = arith.constant 0 : i32
    return %arg0, %c0_i32 : i32, i32
  }
}

</mosaic_0001>

<llo_original>
// kernel: tpu_custom_call.1
$region0: #{tpu_custom_call.1}
  #allocation0 [shape = 'u32[]', space=smem, size = 0x4, offset = 0x4, fixed_abs, tag = 'smem constant byte address 0x4 - core index']
  #allocation1 [shape = 'u32[144,128]{1,0:T(1,128)}', space=vmem, size = 0x12000, scoped, tag = 'internal scratch']
  %s0 = inlined_call_operand.hbm [shape: f32[2,128], index: 0, kind: input, shape index: {}]
  %s1 = inlined_call_operand.hbm [shape: f32[128,128], index: 1, kind: input, shape index: {}]
  %s2 = inlined_call_operand.vmem [shape: f32[1,128], index: 2, kind: input, shape index: {}]
  %s3 = inlined_call_operand.hbm [shape: f32[128,128], index: 3, kind: input, shape index: {}]
  %s4 = inlined_call_operand.vmem [shape: f32[1,128], index: 4, kind: input, shape index: {}]
  %s5 = inlined_call_operand.hbm [shape: f32[128,128], index: 5, kind: input, shape index: {}]
  %s6 = inlined_call_operand.vmem [shape: f32[1,128], index: 6, kind: input, shape index: {}]
  %s7 = inlined_call_operand.vmem [shape: f32[1,128], index: 7, kind: input, shape index: {}]
  %s8 = inlined_call_operand.hbm [shape: f32[128,128], index: 8, kind: input, shape index: {}]
  %s9 = inlined_call_operand.vmem [shape: f32[1,128], index: 9, kind: input, shape index: {}]
  %s10 = inlined_call_operand.hbm [shape: f32[128,128], index: 10, kind: input, shape index: {}]
  %s11 = inlined_call_operand.vmem [shape: f32[1,128], index: 11, kind: input, shape index: {}]
  %s12 = inlined_call_operand.hbm [shape: f32[2,128], index: 12, kind: output, shape index: {}]
  %s13 = sld [smem:[#allocation0]]
  $region82: #{tpu_custom_call.1} parent=0
    _
  %s15 = ssub.s32 1, %s13
  %s16 = scalar_select 0, %s15, %s13
  $region1: #{tpu_custom_call.1} parent=0
    #allocation2 [shape = 'u8[1024]{0}', space=vmem, size = 0x400, scoped, tag = 'input window, operand 0, single buffered']
    #allocation3 [shape = 's32[1]{0}', space=sflag, size = 0x4, scoped, tag = 'scoped memory for tpu_custom_call.1']
    #allocation4 [shape = 's32[1]{0}', space=sflag, size = 0x4, scoped, tag = 'scoped memory for tpu_custom_call.1']
    #allocation5 [shape = 'u8[65536]{0}', space=vmem, size = 0x10000, scoped, tag = 'input window, operand 1, single buffered']
    #allocation6 [shape = 's32[1]{0}', space=sflag, size = 0x4, scoped, tag = 'scoped memory for tpu_custom_call.1']
    #allocation7 [shape = 'u8[65536]{0}', space=vmem, size = 0x10000, scoped, tag = 'input window, operand 3, single buffered']
    #allocation8 [shape = 'u8[65536]{0}', space=vmem, size = 0x10000, scoped, tag = 'input window, operand 5, single buffered']
    #allocation9 [shape = 's32[1]{0}', space=sflag, size = 0x4, scoped, tag = 'scoped memory for tpu_custom_call.1']
    #allocation10 [shape = 'u8[65536]{0}', space=vmem, size = 0x10000, scoped, tag = 'input window, operand 8, single buffered']
    #allocation11 [shape = 'u8[65536]{0}', space=vmem, size = 0x10000, scoped, tag = 'input window, operand 10, single buffered']
    #allocation12 [shape = 's32[1]{0}', space=sflag, size = 0x4, scoped, tag = 'scoped memory for tpu_custom_call.1']
    #allocation13 [shape = 'u8[1024]{0}', space=vmem, size = 0x400, scoped, tag = 'output window, operand 0, single buffered']
    %17 = vsyncpa [#allocation3], 0
    %18 = vsyncpa [#allocation6], 0
    %19 = vsyncpa [#allocation9], 0
    %20 = vsyncpa [#allocation12], 0
    %21 = vsyncpa [#allocation4], 0
    // Predicated region
    $region2: #{tpu_custom_call.1} parent=1 // pred_check
      _
    $region3: #{tpu_custom_call.1} parent=1 // pred_check_branch
      %23 = sbr.rel (0) target = $region5
    $region4: #{tpu_custom_call.1} parent=1 // pred_region
      %s25 = ssub.s32 32, 32
      %26 = vsyncadd [#allocation3], %s25
      %s28 = sshll.u32 [#allocation2], 4
      %s29 = int_to_ptr.vmem [resolvable:$true] %s28
      %31 = dma.hbm_to_vmem [thread:$0]  %s0, 32, %s29, [#allocation3]
    $region5: #{tpu_custom_call.1} parent=1 // pred_fallthru
      _
    // Predicated region
    $region6: #{tpu_custom_call.1} parent=1 // pred_check
      _
    $region7: #{tpu_custom_call.1} parent=1 // pred_check_branch
      %33 = sbr.rel (0) target = $region9
    $region8: #{tpu_custom_call.1} parent=1 // pred_region
      %s35 = ssub.s32 2048, 2048
      %36 = vsyncadd [#allocation6], %s35
      %s37 = sshll.u32 [#allocation5], 4
      %s38 = int_to_ptr.vmem [resolvable:$true] %s37
      %43 = dma.hbm_to_vmem [thread:$0]  %s1, 2048, %s38, [#allocation6], 128, 128, 8
    $region9: #{tpu_custom_call.1} parent=1 // pred_fallthru
      _
    // Predicated region
    $region10: #{tpu_custom_call.1} parent=1 // pred_check
      _
    $region11: #{tpu_custom_call.1} parent=1 // pred_check_branch
      %45 = sbr.rel (0) target = $region13
    $region12: #{tpu_custom_call.1} parent=1 // pred_region
      _
    $region13: #{tpu_custom_call.1} parent=1 // pred_fallthru
      _
    // Predicated region
    $region14: #{tpu_custom_call.1} parent=1 // pred_check
      _
    $region15: #{tpu_custom_call.1} parent=1 // pred_check_branch
      %47 = sbr.rel (0) target = $region17
    $region16: #{tpu_custom_call.1} parent=1 // pred_region
      %s49 = ssub.s32 2048, 2048
      %50 = vsyncadd [#allocation6], %s49
      %s51 = sshll.u32 [#allocation7], 4
      %s52 = int_to_ptr.vmem [resolvable:$true] %s51
      %57 = dma.hbm_to_vmem [thread:$0]  %s3, 2048, %s52, [#allocation6], 128, 128, 8
    $region17: #{tpu_custom_call.1} parent=1 // pred_fallthru
      _
    // Predicated region
    $region18: #{tpu_custom_call.1} parent=1 // pred_check
      _
    $region19: #{tpu_custom_call.1} parent=1 // pred_check_branch
      %59 = sbr.rel (0) target = $region21
    $region20: #{tpu_custom_call.1} parent=1 // pred_region
      _
    $region21: #{tpu_custom_call.1} parent=1 // pred_fallthru
      _
    // Predicated region
    $region22: #{tpu_custom_call.1} parent=1 // pred_check
      _
    $region23: #{tpu_custom_call.1} parent=1 // pred_check_branch
      %61 = sbr.rel (0) target = $region25
    $region24: #{tpu_custom_call.1} parent=1 // pred_region
      %s63 = ssub.s32 2048, 2048
      %64 = vsyncadd [#allocation9], %s63
      %s65 = sshll.u32 [#allocation8], 4
      %s66 = int_to_ptr.vmem [resolvable:$true] %s65
      %71 = dma.hbm_to_vmem [thread:$0]  %s5, 2048, %s66, [#allocation9], 128, 128, 8
    $region25: #{tpu_custom_call.1} parent=1 // pred_fallthru
      _
    // Predicated region
    $region26: #{tpu_custom_call.1} parent=1 // pred_check
      _
    $region27: #{tpu_custom_call.1} parent=1 // pred_check_branch
      %73 = sbr.rel (0) target = $region29
    $region28: #{tpu_custom_call.1} parent=1 // pred_region
      _
    $region29: #{tpu_custom_call.1} parent=1 // pred_fallthru
      _
    // Predicated region
    $region30: #{tpu_custom_call.1} parent=1 // pred_check
      _
    $region31: #{tpu_custom_call.1} parent=1 // pred_check_branch
      %75 = sbr.rel (0) target = $region33
    $region32: #{tpu_custom_call.1} parent=1 // pred_region
      _
    $region33: #{tpu_custom_call.1} parent=1 // pred_fallthru
      _
    // Predicated region
    $region34: #{tpu_custom_call.1} parent=1 // pred_check
      _
    $region35: #{tpu_custom_call.1} parent=1 // pred_check_branch
      %77 = sbr.rel (0) target = $region37
    $region36: #{tpu_custom_call.1} parent=1 // pred_region
      %s79 = ssub.s32 2048, 2048
      %80 = vsyncadd [#allocation9], %s79
      %s81 = sshll.u32 [#allocation10], 4
      %s82 = int_to_ptr.vmem [resolvable:$true] %s81
      %87 = dma.hbm_to_vmem [thread:$0]  %s8, 2048, %s82, [#allocation9], 128, 128, 8
    $region37: #{tpu_custom_call.1} parent=1 // pred_fallthru
      _
    // Predicated region
    $region38: #{tpu_custom_call.1} parent=1 // pred_check
      _
    $region39: #{tpu_custom_call.1} parent=1 // pred_check_branch
      %89 = sbr.rel (0) target = $region41
    $region40: #{tpu_custom_call.1} parent=1 // pred_region
      _
    $region41: #{tpu_custom_call.1} parent=1 // pred_fallthru
      _
    // Predicated region
    $region42: #{tpu_custom_call.1} parent=1 // pred_check
      _
    $region43: #{tpu_custom_call.1} parent=1 // pred_check_branch
      %91 = sbr.rel (0) target = $region45
    $region44: #{tpu_custom_call.1} parent=1 // pred_region
      %s93 = ssub.s32 2048, 2048
      %94 = vsyncadd [#allocation12], %s93
      %s95 = sshll.u32 [#allocation11], 4
      %s96 = int_to_ptr.vmem [resolvable:$true] %s95
      %101 = dma.hbm_to_vmem [thread:$0]  %s10, 2048, %s96, [#allocation12], 128, 128, 8
    $region45: #{tpu_custom_call.1} parent=1 // pred_fallthru
      _
    // Predicated region
    $region46: #{tpu_custom_call.1} parent=1 // pred_check
      _
    $region47: #{tpu_custom_call.1} parent=1 // pred_check_branch
      %103 = sbr.rel (0) target = $region49
    $region48: #{tpu_custom_call.1} parent=1 // pred_region
      _
    $region49: #{tpu_custom_call.1} parent=1 // pred_fallthru
      _
    // Predicated region
    $region50: #{tpu_custom_call.1} parent=1 // pred_check
      _
    $region51: #{tpu_custom_call.1} parent=1 // pred_check_branch
      %105 = sbr.rel (0) target = $region53
    $region52: #{tpu_custom_call.1} parent=1 // pred_region
      %106 = dma.done [#allocation3], 32
    $region53: #{tpu_custom_call.1} parent=1 // pred_fallthru
      _
    // Predicated region
    $region54: #{tpu_custom_call.1} parent=1 // pred_check
      _
    $region55: #{tpu_custom_call.1} parent=1 // pred_check_branch
      %108 = sbr.rel (0) target = $region57
    $region56: #{tpu_custom_call.1} parent=1 // pred_region
      %109 = dma.done [#allocation6], 2048
    $region57: #{tpu_custom_call.1} parent=1 // pred_fallthru
      _
    // Predicated region
    $region58: #{tpu_custom_call.1} parent=1 // pred_check
      _
    $region59: #{tpu_custom_call.1} parent=1 // pred_check_branch
      %111 = sbr.rel (0) target = $region61
    $region60: #{tpu_custom_call.1} parent=1 // pred_region
      %112 = dma.done [#allocation6], 2048
    $region61: #{tpu_custom_call.1} parent=1 // pred_fallthru
      _
    // Predicated region
    $region62: #{tpu_custom_call.1} parent=1 // pred_check
      _
    $region63: #{tpu_custom_call.1} parent=1 // pred_check_branch
      %114 = sbr.rel (0) target = $region65
    $region64: #{tpu_custom_call.1} parent=1 // pred_region
      %115 = dma.done [#allocation9], 2048
    $region65: #{tpu_custom_call.1} parent=1 // pred_fallthru
      _
    // Predicated region
    $region66: #{tpu_custom_call.1} parent=1 // pred_check
      _
    $region67: #{tpu_custom_call.1} parent=1 // pred_check_branch
      %117 = sbr.rel (0) target = $region69
    $region68: #{tpu_custom_call.1} parent=1 // pred_region
      %118 = dma.done [#allocation9], 2048
    $region69: #{tpu_custom_call.1} parent=1 // pred_fallthru
      _
    // Predicated region
    $region70: #{tpu_custom_call.1} parent=1 // pred_check
      _
    $region71: #{tpu_custom_call.1} parent=1 // pred_check_branch
      %120 = sbr.rel (0) target = $region73
    $region72: #{tpu_custom_call.1} parent=1 // pred_region
      %121 = dma.done [#allocation12], 2048
    $region73: #{tpu_custom_call.1} parent=1 // pred_fallthru
      _
    %v122 = vld [vmem:[#allocation2] sm:$0x3]
    %v123 = vld [vmem:[#allocation5] sm:$0xff]
    %v124 = vld [vmem:[#allocation5 + $0x8] sm:$0xff]
    %v125 = vld [vmem:[#allocation5 + $0x10] sm:$0xff]
    %v126 = vld [vmem:[#allocation5 + $0x18] sm:$0xff]
    %v127 = vld [vmem:[#allocation5 + $0x20] sm:$0xff]
    %v128 = vld [vmem:[#allocation5 + $0x28] sm:$0xff]
    %v129 = vld [vmem:[#allocation5 + $0x30] sm:$0xff]
    %v130 = vld [vmem:[#allocation5 + $0x38] sm:$0xff]
    %v131 = vld [vmem:[#allocation5 + $0x40] sm:$0xff]
    %v132 = vld [vmem:[#allocation5 + $0x48] sm:$0xff]
    %v133 = vld [vmem:[#allocation5 + $0x50] sm:$0xff]
    %v134 = vld [vmem:[#allocation5 + $0x58] sm:$0xff]
    %v135 = vld [vmem:[#allocation5 + $0x60] sm:$0xff]
    %v136 = vld [vmem:[#allocation5 + $0x68] sm:$0xff]
    %v137 = vld [vmem:[#allocation5 + $0x70] sm:$0xff]
    %v138 = vld [vmem:[#allocation5 + $0x78] sm:$0xff]
    %v139 = vld [vmem:[%s2] sm:$0x1]
    %v141 = vlaneseq
    %v142 = vshrl.u32 %v141, 7
    %v143 = vsub.s32 0, %v142
    %v144 = vrot.slane %v139, %v143
    %146 = vmatprep.subr.mxu0 0.0
    %147 = vmatpush1.msra.mxu0 %v123
    %148 = vmatprep.subr.mxu0 0.0
    %149 = vmatpush1.msra.mxu0 %v124
    %150 = vmatprep.subr.mxu0 0.0
    %151 = vmatpush1.msra.mxu0 %v125
    %152 = vmatprep.subr.mxu0 0.0
    %153 = vmatpush1.msra.mxu0 %v126
    %154 = vmatprep.subr.mxu0 0.0
    %155 = vmatpush1.msra.mxu0 %v127
    %156 = vmatprep.subr.mxu0 0.0
    %157 = vmatpush1.msra.mxu0 %v128
    %158 = vmatprep.subr.mxu0 0.0
    %159 = vmatpush1.msra.mxu0 %v129
    %160 = vmatprep.subr.mxu0 0.0
    %161 = vmatpush1.msra.mxu0 %v130
    %162 = vmatprep.subr.mxu0 0.0
    %163 = vmatpush1.msra.mxu0 %v131
    %164 = vmatprep.subr.mxu0 0.0
    %165 = vmatpush1.msra.mxu0 %v132
    %166 = vmatprep.subr.mxu0 0.0
    %167 = vmatpush1.msra.mxu0 %v133
    %168 = vmatprep.subr.mxu0 0.0
    %169 = vmatpush1.msra.mxu0 %v134
    %170 = vmatprep.subr.mxu0 0.0
    %171 = vmatpush1.msra.mxu0 %v135
    %172 = vmatprep.subr.mxu0 0.0
    %173 = vmatpush1.msra.mxu0 %v136
    %174 = vmatprep.subr.mxu0 0.0
    %175 = vmatpush1.msra.mxu0 %v137
    %176 = vmatprep.subr.mxu0 0.0
    %177 = vmatpush1.msra.mxu0 %v138
    %178 = vmatprep.subr.mxu0 0.0
    %179 = vmatpush1.msra.mxu0 0.0
    %180 = vmatprep.subr.mxu0 0.0
    %181 = vmatpush1.msra.mxu0 0.0
    %182 = vmatprep.subr.mxu0 0.0
    %183 = vmatpush1.msra.mxu0 0.0
    %184 = vmatprep.subr.mxu0 0.0
    %185 = vmatpush1.msra.mxu0 0.0
    %186 = vmatprep.subr.mxu0 0.0
    %187 = vmatpush1.msra.mxu0 0.0
    %188 = vmatprep.subr.mxu0 0.0
    %189 = vmatpush1.msra.mxu0 0.0
    %190 = vmatprep.subr.mxu0 0.0
    %191 = vmatpush1.msra.mxu0 0.0
    %192 = vmatprep.subr.mxu0 0.0
    %193 = vmatpush1.msra.mxu0 0.0
    %194 = vmatprep.subr.mxu0 0.0
    %195 = vmatpush1.msra.mxu0 0.0
    %196 = vmatprep.subr.mxu0 0.0
    %197 = vmatpush1.msra.mxu0 0.0
    %198 = vmatprep.subr.mxu0 0.0
    %199 = vmatpush1.msra.mxu0 0.0
    %200 = vmatprep.subr.mxu0 0.0
    %201 = vmatpush1.msra.mxu0 0.0
    %202 = vmatprep.subr.mxu0 0.0
    %203 = vmatpush1.msra.mxu0 0.0
    %204 = vmatprep.subr.mxu0 0.0
    %205 = vmatpush1.msra.mxu0 0.0
    %206 = vmatprep.subr.mxu0 0.0
    %207 = vmatpush1.msra.mxu0 0.0
    %208 = vmatprep.subr.mxu0 0.0
    %209 = vmatpush1.msra.mxu0 0.0
    %210 = vmatprep.mubr.f32.mxu0 0.0
    %211 = vmatmul.mubr.f32.gmra.mrb[0].mxu0 %v122
    %v212 = vpop.f32.mrb[0].mxu0
    %v213 = vadd.f32 %v144, %v212
    %v214 = vpop.f32.mrb[0].mxu0
    %215 = vdwg.mxu0
    %v216 = vld [vmem:[#allocation7] sm:$0xff]
    %v217 = vld [vmem:[#allocation7 + $0x8] sm:$0xff]
    %v218 = vld [vmem:[#allocation7 + $0x10] sm:$0xff]
    %v219 = vld [vmem:[#allocation7 + $0x18] sm:$0xff]
    %v220 = vld [vmem:[#allocation7 + $0x20] sm:$0xff]
    %v221 = vld [vmem:[#allocation7 + $0x28] sm:$0xff]
    %v222 = vld [vmem:[#allocation7 + $0x30] sm:$0xff]
    %v223 = vld [vmem:[#allocation7 + $0x38] sm:$0xff]
    %v224 = vld [vmem:[#allocation7 + $0x40] sm:$0xff]
    %v225 = vld [vmem:[#allocation7 + $0x48] sm:$0xff]
    %v226 = vld [vmem:[#allocation7 + $0x50] sm:$0xff]
    %v227 = vld [vmem:[#allocation7 + $0x58] sm:$0xff]
    %v228 = vld [vmem:[#allocation7 + $0x60] sm:$0xff]
    %v229 = vld [vmem:[#allocation7 + $0x68] sm:$0xff]
    %v230 = vld [vmem:[#allocation7 + $0x70] sm:$0xff]
    %v231 = vld [vmem:[#allocation7 + $0x78] sm:$0xff]
    %v232 = vld [vmem:[%s4] sm:$0x1]
    %v234 = vlaneseq
    %v235 = vshrl.u32 %v234, 7
    %v236 = vsub.s32 0, %v235
    %v237 = vrot.slane %v232, %v236
    %239 = vmatprep.subr.mxu0 0.0
    %240 = vmatpush1.msra.mxu0 %v216
    %241 = vmatprep.subr.mxu0 0.0
    %242 = vmatpush1.msra.mxu0 %v217
    %243 = vmatprep.subr.mxu0 0.0
    %244 = vmatpush1.msra.mxu0 %v218
    %245 = vmatprep.subr.mxu0 0.0
    %246 = vmatpush1.msra.mxu0 %v219
    %247 = vmatprep.subr.mxu0 0.0
    %248 = vmatpush1.msra.mxu0 %v220
    %249 = vmatprep.subr.mxu0 0.0
    %250 = vmatpush1.msra.mxu0 %v221
    %251 = vmatprep.subr.mxu0 0.0
    %252 = vmatpush1.msra.mxu0 %v222
    %253 = vmatprep.subr.mxu0 0.0
    %254 = vmatpush1.msra.mxu0 %v223
    %255 = vmatprep.subr.mxu0 0.0
    %256 = vmatpush1.msra.mxu0 %v224
    %257 = vmatprep.subr.mxu0 0.0
    %258 = vmatpush1.msra.mxu0 %v225
    %259 = vmatprep.subr.mxu0 0.0
    %260 = vmatpush1.msra.mxu0 %v226
    %261 = vmatprep.subr.mxu0 0.0
    %262 = vmatpush1.msra.mxu0 %v227
    %263 = vmatprep.subr.mxu0 0.0
    %264 = vmatpush1.msra.mxu0 %v228
    %265 = vmatprep.subr.mxu0 0.0
    %266 = vmatpush1.msra.mxu0 %v229
    %267 = vmatprep.subr.mxu0 0.0
    %268 = vmatpush1.msra.mxu0 %v230
    %269 = vmatprep.subr.mxu0 0.0
    %270 = vmatpush1.msra.mxu0 %v231
    %271 = vmatprep.subr.mxu0 0.0
    %272 = vmatpush1.msra.mxu0 0.0
    %273 = vmatprep.subr.mxu0 0.0
    %274 = vmatpush1.msra.mxu0 0.0
    %275 = vmatprep.subr.mxu0 0.0
    %276 = vmatpush1.msra.mxu0 0.0
    %277 = vmatprep.subr.mxu0 0.0
    %278 = vmatpush1.msra.mxu0 0.0
    %279 = vmatprep.subr.mxu0 0.0
    %280 = vmatpush1.msra.mxu0 0.0
    %281 = vmatprep.subr.mxu0 0.0
    %282 = vmatpush1.msra.mxu0 0.0
    %283 = vmatprep.subr.mxu0 0.0
    %284 = vmatpush1.msra.mxu0 0.0
    %285 = vmatprep.subr.mxu0 0.0
    %286 = vmatpush1.msra.mxu0 0.0
    %287 = vmatprep.subr.mxu0 0.0
    %288 = vmatpush1.msra.mxu0 0.0
    %289 = vmatprep.subr.mxu0 0.0
    %290 = vmatpush1.msra.mxu0 0.0
    %291 = vmatprep.subr.mxu0 0.0
    %292 = vmatpush1.msra.mxu0 0.0
    %293 = vmatprep.subr.mxu0 0.0
    %294 = vmatpush1.msra.mxu0 0.0
    %295 = vmatprep.subr.mxu0 0.0
    %296 = vmatpush1.msra.mxu0 0.0
    %297 = vmatprep.subr.mxu0 0.0
    %298 = vmatpush1.msra.mxu0 0.0
    %299 = vmatprep.subr.mxu0 0.0
    %300 = vmatpush1.msra.mxu0 0.0
    %301 = vmatprep.subr.mxu0 0.0
    %302 = vmatpush1.msra.mxu0 0.0
    %303 = vmatprep.mubr.f32.mxu0 0.0
    %304 = vmatmul.mubr.f32.gmra.mrb[0].mxu0 %v122
    %v305 = vpop.f32.mrb[0].mxu0
    %v306 = vadd.f32 %v237, %v305
    %v307 = vpop.f32.mrb[0].mxu0
    %308 = vdwg.mxu0
    %v309 = vmul.f32 %v213, 0.5
    %v310 = vmul.f32 %v213, 0.70710677
    %v311 = verf.f32.pop %v310
    %v312 = vadd.f32 %v311, 1.0
    %v313 = vmul.f32 %v309, %v312
    %v314 = vmul.f32 %v306, 0.5
    %v315 = vmul.f32 %v306, 0.70710677
    %v316 = verf.f32.pop %v315
    %v317 = vadd.f32 %v316, 1.0
    %v318 = vmul.f32 %v314, %v317
    %v319 = vld [vmem:[#allocation8] sm:$0xff]
    %v320 = vld [vmem:[#allocation8 + $0x8] sm:$0xff]
    %v321 = vld [vmem:[#allocation8 + $0x10] sm:$0xff]
    %v322 = vld [vmem:[#allocation8 + $0x18] sm:$0xff]
    %v323 = vld [vmem:[#allocation8 + $0x20] sm:$0xff]
    %v324 = vld [vmem:[#allocation8 + $0x28] sm:$0xff]
    %v325 = vld [vmem:[#allocation8 + $0x30] sm:$0xff]
    %v326 = vld [vmem:[#allocation8 + $0x38] sm:$0xff]
    %v327 = vld [vmem:[#allocation8 + $0x40] sm:$0xff]
    %v328 = vld [vmem:[#allocation8 + $0x48] sm:$0xff]
    %v329 = vld [vmem:[#allocation8 + $0x50] sm:$0xff]
    %v330 = vld [vmem:[#allocation8 + $0x58] sm:$0xff]
    %v331 = vld [vmem:[#allocation8 + $0x60] sm:$0xff]
    %v332 = vld [vmem:[#allocation8 + $0x68] sm:$0xff]
    %v333 = vld [vmem:[#allocation8 + $0x70] sm:$0xff]
    %v334 = vld [vmem:[#allocation8 + $0x78] sm:$0xff]
    %335 = vmatprep.subr.mxu0 0.0
    %336 = vmatpush1.msra.mxu0 %v319
    %337 = vmatprep.subr.mxu0 0.0
    %338 = vmatpush1.msra.mxu0 %v320
    %339 = vmatprep.subr.mxu0 0.0
    %340 = vmatpush1.msra.mxu0 %v321
    %341 = vmatprep.subr.mxu0 0.0
    %342 = vmatpush1.msra.mxu0 %v322
    %343 = vmatprep.subr.mxu0 0.0
    %344 = vmatpush1.msra.mxu0 %v323
    %345 = vmatprep.subr.mxu0 0.0
    %346 = vmatpush1.msra.mxu0 %v324
    %347 = vmatprep.subr.mxu0 0.0
    %348 = vmatpush1.msra.mxu0 %v325
    %349 = vmatprep.subr.mxu0 0.0
    %350 = vmatpush1.msra.mxu0 %v326
    %351 = vmatprep.subr.mxu0 0.0
    %352 = vmatpush1.msra.mxu0 %v327
    %353 = vmatprep.subr.mxu0 0.0
    %354 = vmatpush1.msra.mxu0 %v328
    %355 = vmatprep.subr.mxu0 0.0
    %356 = vmatpush1.msra.mxu0 %v329
    %357 = vmatprep.subr.mxu0 0.0
    %358 = vmatpush1.msra.mxu0 %v330
    %359 = vmatprep.subr.mxu0 0.0
    %360 = vmatpush1.msra.mxu0 %v331
    %361 = vmatprep.subr.mxu0 0.0
    %362 = vmatpush1.msra.mxu0 %v332
    %363 = vmatprep.subr.mxu0 0.0
    %364 = vmatpush1.msra.mxu0 %v333
    %365 = vmatprep.subr.mxu0 0.0
    %366 = vmatpush1.msra.mxu0 %v334
    %367 = vmatprep.subr.mxu0 0.0
    %368 = vmatpush1.msra.mxu0 0.0
    %369 = vmatprep.subr.mxu0 0.0
    %370 = vmatpush1.msra.mxu0 0.0
    %371 = vmatprep.subr.mxu0 0.0
    %372 = vmatpush1.msra.mxu0 0.0
    %373 = vmatprep.subr.mxu0 0.0
    %374 = vmatpush1.msra.mxu0 0.0
    %375 = vmatprep.subr.mxu0 0.0
    %376 = vmatpush1.msra.mxu0 0.0
    %377 = vmatprep.subr.mxu0 0.0
    %378 = vmatpush1.msra.mxu0 0.0
    %379 = vmatprep.subr.mxu0 0.0
    %380 = vmatpush1.msra.mxu0 0.0
    %381 = vmatprep.subr.mxu0 0.0
    %382 = vmatpush1.msra.mxu0 0.0
    %383 = vmatprep.subr.mxu0 0.0
    %384 = vmatpush1.msra.mxu0 0.0
    %385 = vmatprep.subr.mxu0 0.0
    %386 = vmatpush1.msra.mxu0 0.0
    %387 = vmatprep.subr.mxu0 0.0
    %388 = vmatpush1.msra.mxu0 0.0
    %389 = vmatprep.subr.mxu0 0.0
    %390 = vmatpush1.msra.mxu0 0.0
    %391 = vmatprep.subr.mxu0 0.0
    %392 = vmatpush1.msra.mxu0 0.0
    %393 = vmatprep.subr.mxu0 0.0
    %394 = vmatpush1.msra.mxu0 0.0
    %395 = vmatprep.subr.mxu0 0.0
    %396 = vmatpush1.msra.mxu0 0.0
    %397 = vmatprep.subr.mxu0 0.0
    %398 = vmatpush1.msra.mxu0 0.0
    %399 = vmatprep.mubr.f32.mxu0 0.0
    %400 = vmatmul.mubr.f32.gmra.mrb[0].mxu0 %v318
    %v401 = vpop.f32.mrb[0].mxu0
    %v402 = vadd.f32 0.0, %v401
    %v403 = vpop.f32.mrb[0].mxu0
    %404 = vdwg.mxu0
    %v405 = vsub.f32 %v318, %v402
    %v406 = vmul.f32 %v405, %v405
    %407 = vmatprep.subr.mxu0 0.0
    %408 = vmatpush1.msra.mxu0 %v319
    %409 = vmatprep.subr.mxu0 0.0
    %410 = vmatpush1.msra.mxu0 %v320
    %411 = vmatprep.subr.mxu0 0.0
    %412 = vmatpush1.msra.mxu0 %v321
    %413 = vmatprep.subr.mxu0 0.0
    %414 = vmatpush1.msra.mxu0 %v322
    %415 = vmatprep.subr.mxu0 0.0
    %416 = vmatpush1.msra.mxu0 %v323
    %417 = vmatprep.subr.mxu0 0.0
    %418 = vmatpush1.msra.mxu0 %v324
    %419 = vmatprep.subr.mxu0 0.0
    %420 = vmatpush1.msra.mxu0 %v325
    %421 = vmatprep.subr.mxu0 0.0
    %422 = vmatpush1.msra.mxu0 %v326
    %423 = vmatprep.subr.mxu0 0.0
    %424 = vmatpush1.msra.mxu0 %v327
    %425 = vmatprep.subr.mxu0 0.0
    %426 = vmatpush1.msra.mxu0 %v328
    %427 = vmatprep.subr.mxu0 0.0
    %428 = vmatpush1.msra.mxu0 %v329
    %429 = vmatprep.subr.mxu0 0.0
    %430 = vmatpush1.msra.mxu0 %v330
    %431 = vmatprep.subr.mxu0 0.0
    %432 = vmatpush1.msra.mxu0 %v331
    %433 = vmatprep.subr.mxu0 0.0
    %434 = vmatpush1.msra.mxu0 %v332
    %435 = vmatprep.subr.mxu0 0.0
    %436 = vmatpush1.msra.mxu0 %v333
    %437 = vmatprep.subr.mxu0 0.0
    %438 = vmatpush1.msra.mxu0 %v334
    %439 = vmatprep.subr.mxu0 0.0
    %440 = vmatpush1.msra.mxu0 0.0
    %441 = vmatprep.subr.mxu0 0.0
    %442 = vmatpush1.msra.mxu0 0.0
    %443 = vmatprep.subr.mxu0 0.0
    %444 = vmatpush1.msra.mxu0 0.0
    %445 = vmatprep.subr.mxu0 0.0
    %446 = vmatpush1.msra.mxu0 0.0
    %447 = vmatprep.subr.mxu0 0.0
    %448 = vmatpush1.msra.mxu0 0.0
    %449 = vmatprep.subr.mxu0 0.0
    %450 = vmatpush1.msra.mxu0 0.0
    %451 = vmatprep.subr.mxu0 0.0
    %452 = vmatpush1.msra.mxu0 0.0
    %453 = vmatprep.subr.mxu0 0.0
    %454 = vmatpush1.msra.mxu0 0.0
    %455 = vmatprep.subr.mxu0 0.0
    %456 = vmatpush1.msra.mxu0 0.0
    %457 = vmatprep.subr.mxu0 0.0
    %458 = vmatpush1.msra.mxu0 0.0
    %459 = vmatprep.subr.mxu0 0.0
    %460 = vmatpush1.msra.mxu0 0.0
    %461 = vmatprep.subr.mxu0 0.0
    %462 = vmatpush1.msra.mxu0 0.0
    %463 = vmatprep.subr.mxu0 0.0
    %464 = vmatpush1.msra.mxu0 0.0
    %465 = vmatprep.subr.mxu0 0.0
    %466 = vmatpush1.msra.mxu0 0.0
    %467 = vmatprep.subr.mxu0 0.0
    %468 = vmatpush1.msra.mxu0 0.0
    %469 = vmatprep.subr.mxu0 0.0
    %470 = vmatpush1.msra.mxu0 0.0
    %471 = vmatprep.mubr.f32.mxu0 0.0
    %472 = vmatmul.mubr.f32.gmra.mrb[0].mxu0 %v406
    %v473 = vpop.f32.mrb[0].mxu0
    %v474 = vadd.f32 1e-05, %v473
    %v475 = vpop.f32.mrb[0].mxu0
    %476 = vdwg.mxu0
    %v477 = vrsqrt.pop %v474
    %v478 = vmul.f32 %v405, %v477
    %v479 = vld [vmem:[%s6] sm:$0x1]
    %v481 = vlaneseq
    %v482 = vshrl.u32 %v481, 7
    %v483 = vsub.s32 0, %v482
    %v484 = vrot.slane %v479, %v483
    %v486 = vmul.f32 %v478, %v484
    %v487 = vld [vmem:[%s7] sm:$0x1]
    %v489 = vlaneseq
    %v490 = vshrl.u32 %v489, 7
    %v491 = vsub.s32 0, %v490
    %v492 = vrot.slane %v487, %v491
    %v494 = vadd.f32 %v486, %v492
    %v495 = vld [vmem:[#allocation10] sm:$0xff]
    %v496 = vld [vmem:[#allocation10 + $0x8] sm:$0xff]
    %v497 = vld [vmem:[#allocation10 + $0x10] sm:$0xff]
    %v498 = vld [vmem:[#allocation10 + $0x18] sm:$0xff]
    %v499 = vld [vmem:[#allocation10 + $0x20] sm:$0xff]
    %v500 = vld [vmem:[#allocation10 + $0x28] sm:$0xff]
    %v501 = vld [vmem:[#allocation10 + $0x30] sm:$0xff]
    %v502 = vld [vmem:[#allocation10 + $0x38] sm:$0xff]
    %v503 = vld [vmem:[#allocation10 + $0x40] sm:$0xff]
    %v504 = vld [vmem:[#allocation10 + $0x48] sm:$0xff]
    %v505 = vld [vmem:[#allocation10 + $0x50] sm:$0xff]
    %v506 = vld [vmem:[#allocation10 + $0x58] sm:$0xff]
    %v507 = vld [vmem:[#allocation10 + $0x60] sm:$0xff]
    %v508 = vld [vmem:[#allocation10 + $0x68] sm:$0xff]
    %v509 = vld [vmem:[#allocation10 + $0x70] sm:$0xff]
    %v510 = vld [vmem:[#allocation10 + $0x78] sm:$0xff]
    %v511 = vld [vmem:[%s9] sm:$0x1]
    %v513 = vlaneseq
    %v514 = vshrl.u32 %v513, 7
    %v515 = vsub.s32 0, %v514
    %v516 = vrot.slane %v511, %v515
    %518 = vmatprep.subr.mxu0 0.0
    %519 = vmatpush1.msra.mxu0 %v495
    %520 = vmatprep.subr.mxu0 0.0
    %521 = vmatpush1.msra.mxu0 %v496
    %522 = vmatprep.subr.mxu0 0.0
    %523 = vmatpush1.msra.mxu0 %v497
    %524 = vmatprep.subr.mxu0 0.0
    %525 = vmatpush1.msra.mxu0 %v498
    %526 = vmatprep.subr.mxu0 0.0
    %527 = vmatpush1.msra.mxu0 %v499
    %528 = vmatprep.subr.mxu0 0.0
    %529 = vmatpush1.msra.mxu0 %v500
    %530 = vmatprep.subr.mxu0 0.0
    %531 = vmatpush1.msra.mxu0 %v501
    %532 = vmatprep.subr.mxu0 0.0
    %533 = vmatpush1.msra.mxu0 %v502
    %534 = vmatprep.subr.mxu0 0.0
    %535 = vmatpush1.msra.mxu0 %v503
    %536 = vmatprep.subr.mxu0 0.0
    %537 = vmatpush1.msra.mxu0 %v504
    %538 = vmatprep.subr.mxu0 0.0
    %539 = vmatpush1.msra.mxu0 %v505
    %540 = vmatprep.subr.mxu0 0.0
    %541 = vmatpush1.msra.mxu0 %v506
    %542 = vmatprep.subr.mxu0 0.0
    %543 = vmatpush1.msra.mxu0 %v507
    %544 = vmatprep.subr.mxu0 0.0
    %545 = vmatpush1.msra.mxu0 %v508
    %546 = vmatprep.subr.mxu0 0.0
    %547 = vmatpush1.msra.mxu0 %v509
    %548 = vmatprep.subr.mxu0 0.0
    %549 = vmatpush1.msra.mxu0 %v510
    %550 = vmatprep.subr.mxu0 0.0
    %551 = vmatpush1.msra.mxu0 0.0
    %552 = vmatprep.subr.mxu0 0.0
    %553 = vmatpush1.msra.mxu0 0.0
    %554 = vmatprep.subr.mxu0 0.0
    %555 = vmatpush1.msra.mxu0 0.0
    %556 = vmatprep.subr.mxu0 0.0
    %557 = vmatpush1.msra.mxu0 0.0
    %558 = vmatprep.subr.mxu0 0.0
    %559 = vmatpush1.msra.mxu0 0.0
    %560 = vmatprep.subr.mxu0 0.0
    %561 = vmatpush1.msra.mxu0 0.0
    %562 = vmatprep.subr.mxu0 0.0
    %563 = vmatpush1.msra.mxu0 0.0
    %564 = vmatprep.subr.mxu0 0.0
    %565 = vmatpush1.msra.mxu0 0.0
    %566 = vmatprep.subr.mxu0 0.0
    %567 = vmatpush1.msra.mxu0 0.0
    %568 = vmatprep.subr.mxu0 0.0
    %569 = vmatpush1.msra.mxu0 0.0
    %570 = vmatprep.subr.mxu0 0.0
    %571 = vmatpush1.msra.mxu0 0.0
    %572 = vmatprep.subr.mxu0 0.0
    %573 = vmatpush1.msra.mxu0 0.0
    %574 = vmatprep.subr.mxu0 0.0
    %575 = vmatpush1.msra.mxu0 0.0
    %576 = vmatprep.subr.mxu0 0.0
    %577 = vmatpush1.msra.mxu0 0.0
    %578 = vmatprep.subr.mxu0 0.0
    %579 = vmatpush1.msra.mxu0 0.0
    %580 = vmatprep.subr.mxu0 0.0
    %581 = vmatpush1.msra.mxu0 0.0
    %582 = vmatprep.mubr.f32.mxu0 0.0
    %583 = vmatmul.mubr.f32.gmra.mrb[0].mxu0 %v494
    %v584 = vpop.f32.mrb[0].mxu0
    %v585 = vadd.f32 %v516, %v584
    %v586 = vpop.f32.mrb[0].mxu0
    %587 = vdwg.mxu0
    %v588 = vmul.f32 %v585, %v313
    %v589 = vld [vmem:[#allocation11] sm:$0xff]
    %v590 = vld [vmem:[#allocation11 + $0x8] sm:$0xff]
    %v591 = vld [vmem:[#allocation11 + $0x10] sm:$0xff]
    %v592 = vld [vmem:[#allocation11 + $0x18] sm:$0xff]
    %v593 = vld [vmem:[#allocation11 + $0x20] sm:$0xff]
    %v594 = vld [vmem:[#allocation11 + $0x28] sm:$0xff]
    %v595 = vld [vmem:[#allocation11 + $0x30] sm:$0xff]
    %v596 = vld [vmem:[#allocation11 + $0x38] sm:$0xff]
    %v597 = vld [vmem:[#allocation11 + $0x40] sm:$0xff]
    %v598 = vld [vmem:[#allocation11 + $0x48] sm:$0xff]
    %v599 = vld [vmem:[#allocation11 + $0x50] sm:$0xff]
    %v600 = vld [vmem:[#allocation11 + $0x58] sm:$0xff]
    %v601 = vld [vmem:[#allocation11 + $0x60] sm:$0xff]
    %v602 = vld [vmem:[#allocation11 + $0x68] sm:$0xff]
    %v603 = vld [vmem:[#allocation11 + $0x70] sm:$0xff]
    %v604 = vld [vmem:[#allocation11 + $0x78] sm:$0xff]
    %v605 = vld [vmem:[%s11] sm:$0x1]
    %v607 = vlaneseq
    %v608 = vshrl.u32 %v607, 7
    %v609 = vsub.s32 0, %v608
    %v610 = vrot.slane %v605, %v609
    %612 = vmatprep.subr.mxu0 0.0
    %613 = vmatpush1.msra.mxu0 %v589
    %614 = vmatprep.subr.mxu0 0.0
    %615 = vmatpush1.msra.mxu0 %v590
    %616 = vmatprep.subr.mxu0 0.0
    %617 = vmatpush1.msra.mxu0 %v591
    %618 = vmatprep.subr.mxu0 0.0
    %619 = vmatpush1.msra.mxu0 %v592
    %620 = vmatprep.subr.mxu0 0.0
    %621 = vmatpush1.msra.mxu0 %v593
    %622 = vmatprep.subr.mxu0 0.0
    %623 = vmatpush1.msra.mxu0 %v594
    %624 = vmatprep.subr.mxu0 0.0
    %625 = vmatpush1.msra.mxu0 %v595
    %626 = vmatprep.subr.mxu0 0.0
    %627 = vmatpush1.msra.mxu0 %v596
    %628 = vmatprep.subr.mxu0 0.0
    %629 = vmatpush1.msra.mxu0 %v597
    %630 = vmatprep.subr.mxu0 0.0
    %631 = vmatpush1.msra.mxu0 %v598
    %632 = vmatprep.subr.mxu0 0.0
    %633 = vmatpush1.msra.mxu0 %v599
    %634 = vmatprep.subr.mxu0 0.0
    %635 = vmatpush1.msra.mxu0 %v600
    %636 = vmatprep.subr.mxu0 0.0
    %637 = vmatpush1.msra.mxu0 %v601
    %638 = vmatprep.subr.mxu0 0.0
    %639 = vmatpush1.msra.mxu0 %v602
    %640 = vmatprep.subr.mxu0 0.0
    %641 = vmatpush1.msra.mxu0 %v603
    %642 = vmatprep.subr.mxu0 0.0
    %643 = vmatpush1.msra.mxu0 %v604
    %644 = vmatprep.subr.mxu0 0.0
    %645 = vmatpush1.msra.mxu0 0.0
    %646 = vmatprep.subr.mxu0 0.0
    %647 = vmatpush1.msra.mxu0 0.0
    %648 = vmatprep.subr.mxu0 0.0
    %649 = vmatpush1.msra.mxu0 0.0
    %650 = vmatprep.subr.mxu0 0.0
    %651 = vmatpush1.msra.mxu0 0.0
    %652 = vmatprep.subr.mxu0 0.0
    %653 = vmatpush1.msra.mxu0 0.0
    %654 = vmatprep.subr.mxu0 0.0
    %655 = vmatpush1.msra.mxu0 0.0
    %656 = vmatprep.subr.mxu0 0.0
    %657 = vmatpush1.msra.mxu0 0.0
    %658 = vmatprep.subr.mxu0 0.0
    %659 = vmatpush1.msra.mxu0 0.0
    %660 = vmatprep.subr.mxu0 0.0
    %661 = vmatpush1.msra.mxu0 0.0
    %662 = vmatprep.subr.mxu0 0.0
    %663 = vmatpush1.msra.mxu0 0.0
    %664 = vmatprep.subr.mxu0 0.0
    %665 = vmatpush1.msra.mxu0 0.0
    %666 = vmatprep.subr.mxu0 0.0
    %667 = vmatpush1.msra.mxu0 0.0
    %668 = vmatprep.subr.mxu0 0.0
    %669 = vmatpush1.msra.mxu0 0.0
    %670 = vmatprep.subr.mxu0 0.0
    %671 = vmatpush1.msra.mxu0 0.0
    %672 = vmatprep.subr.mxu0 0.0
    %673 = vmatpush1.msra.mxu0 0.0
    %674 = vmatprep.subr.mxu0 0.0
    %675 = vmatpush1.msra.mxu0 0.0
    %676 = vmatprep.mubr.f32.mxu0 0.0
    %677 = vmatmul.mubr.f32.gmra.mrb[0].mxu0 %v588
    %v678 = vpop.f32.mrb[0].mxu0
    %v679 = vadd.f32 %v610, %v678
    %v680 = vpop.f32.mrb[0].mxu0
    %681 = vdwg.mxu0
    %v682 = vadd.f32 %v679, %v122
    %683 = vst [vmem:[#allocation13] sm:$0x3] %v682
    // Predicated region
    $region74: #{tpu_custom_call.1} parent=1 // pred_check
      _
    $region75: #{tpu_custom_call.1} parent=1 // pred_check_branch
      %685 = sbr.rel (0) target = $region77
    $region76: #{tpu_custom_call.1} parent=1 // pred_region
      %s687 = ssub.s32 32, 32
      %688 = vsyncadd [#allocation4], %s687
      %s690 = sshll.u32 [#allocation13], 4
      %s691 = int_to_ptr.vmem [resolvable:$true] %s690
      %693 = dma.vmem_to_hbm [thread:$0]  %s691, 32, %s12, [#allocation4]
    $region77: #{tpu_custom_call.1} parent=1 // pred_fallthru
      _
    // Predicated region
    $region78: #{tpu_custom_call.1} parent=1 // pred_check
      _
    $region79: #{tpu_custom_call.1} parent=1 // pred_check_branch
      %695 = sbr.rel (0) target = $region81
    $region80: #{tpu_custom_call.1} parent=1 // pred_region
      %696 = dma.done [#allocation4], 32
    $region81: #{tpu_custom_call.1} parent=1 // pred_fallthru
      _
    %697 = vsyncpa [#allocation3], 1
    %698 = vsyncpa [#allocation6], 1
    %699 = vsyncpa [#allocation9], 1
    %700 = vsyncpa [#allocation12], 1
    %701 = vsyncpa [#allocation4], 1

</llo_original>
